<compile_context>
chip_gen: v6e
topology: v6e:2x2x1
jax: 0.10.0
libtpu: 0.0.40
codegen_flags: <defaults>
</compile_context>

<pallas_src>
import functools

import jax
import jax.numpy as jnp
from jax.experimental import pallas as pl
from jax.experimental.pallas import tpu as pltpu


def _cdiv(a, b):
    return (a + b - 1) // b


def _sdf_mlp_kernel(n_hidden_layers, *refs):
    """refs = [x_ref, (w_ref, b_ref) * n_hidden_layers, wout_ref, bout_ref, o_ref].

    x_ref is the native point-major (tile_n, feature_dim) block; inside the kernel
    the points are transposed onto the lane axis so every layer is a lane-major
    h = relu(W @ h + b) with shape (hidden, tile_n) and the output block is a
    lane-dense (1, tile_n) f32 row.
    """
    x_ref = refs[0]
    o_ref = refs[-1]
    p = refs[1:-1]

    w0 = p[0][...]        # (hidden, in_dim) f32  (accuracy: first matmul stays f32)
    b0 = p[1][...]        # (hidden, 1) f32

    # In-kernel transpose: points -> lane axis (XLU work, rides an otherwise-idle slot).
    x_t = x_ref[...].T    # (in_dim, tile_n)
    acc = jnp.dot(w0, x_t.astype(w0.dtype), preferred_element_type=jnp.float32) + b0
    h = jnp.maximum(acc, 0.0)        # f32 (hidden, tile_n)

    for k in range(1, n_hidden_layers):
        w = p[2 * k][...]            # (hidden, hidden), compute dtype
        b = p[2 * k + 1][...]        # (hidden, 1) f32
        acc = jnp.dot(w, h.astype(w.dtype), preferred_element_type=jnp.float32) + b
        h = jnp.maximum(acc, 0.0)    # bias + ReLU in f32 (safe on v5e's f32-only VPU)

    wout = p[2 * n_hidden_layers][...]        # (1, hidden), compute dtype
    bout = p[2 * n_hidden_layers + 1][...]    # (1, 1) f32
    o_ref[...] = (
        jnp.dot(wout, h.astype(wout.dtype), preferred_element_type=jnp.float32) + bout
    )


def sdf_decoder_forward(feature, params, *, tile_n=8192, compute_dtype=jnp.float32):
    """feature: (N, feature_dim) f32.
    params: list of (W, b) with W in torch layout (out, in), b (out,).
    Returns (N,) f32, matching `self.lout(h).squeeze(1)`.
    """
    n, in_dim = feature.shape
    n_hidden_layers = len(params) - 1

    # --- Tile selection ----------------------------------------------------
    # Lane blocks of 128.  Cap the tile so there are >= 2 grid steps whenever
    # N > 128 (feeds both TensorCores on v7x via the "parallel" axis); otherwise
    # use the requested tile (sweep 8192..32768 for large N; per-step VMEM is
    # ~2 * tile_n * (in_dim*4) input + a few (hidden, tile_n) f32 intermediates).
    n_lane_blocks = _cdiv(n, 128)
    max_tile_blocks = max(1, _cdiv(n_lane_blocks, 2))
    tile_blocks = max(1, min(tile_n // 128, max_tile_blocks))
    tile_n_eff = tile_blocks * 128
    grid_n = _cdiv(n, tile_n_eff)   # ragged last block handled by Pallas masking

    # --- Params / specs -----------------------------------------------------
    flat_params = []
    in_specs = [pl.BlockSpec((tile_n_eff, in_dim), lambda i: (i, 0))]
    for k, (w, b) in enumerate(params):
        # First layer weight stays f32 (features go into the first matmul in f32);
        # deeper layers use the requested compute dtype (bf16 opt-in).
        w_dtype = jnp.float32 if k == 0 else compute_dtype
        w_c = jnp.asarray(w).astype(w_dtype)               # (out, in), torch layout
        b_c = jnp.asarray(b).reshape(-1, 1).astype(jnp.float32)   # (out, 1)
        flat_params.extend([w_c, b_c])
        # Full (untiled) blocks, constant index_map -> VMEM-resident across the grid.
        in_specs.append(pl.BlockSpec(w_c.shape, lambda i: (0, 0)))
        in_specs.append(pl.BlockSpec(b_c.shape, lambda i: (0, 0)))

    # Lane-dense output: one (1, tile_n) f32 row per grid step.
    out_spec = pl.BlockSpec((1, tile_n_eff), lambda i: (0, i))

    # --- Cost hint for XLA's scheduler --------------------------------------
    flops = 0
    param_bytes = 0
    for (w, b) in params:
        fo, fi = w.shape
        flops += n * (2 * fo * fi + fo)
        param_bytes += (w.size + b.size) * 4
    cost = pl.CostEstimate(
        flops=int(flops),
        transcendentals=0,
        bytes_accessed=int(n * in_dim * feature.dtype.itemsize + n * 4 + param_bytes),
    )

    kernel = functools.partial(_sdf_mlp_kernel, n_hidden_layers)

    out = pl.pallas_call(
        kernel,
        out_shape=jax.ShapeDtypeStruct((1, n), jnp.float32),
        grid_spec=pltpu.PrefetchScalarGridSpec(
            num_scalar_prefetch=0,
            grid=(grid_n,),
            in_specs=in_specs,
            out_specs=out_spec,
        ),
        compiler_params=pltpu.CompilerParams(
            # N axis is embarrassingly parallel -> shards across v7x's 2 TensorCores.
            dimension_semantics=("parallel",),
            # Headroom over v5e's 16 MiB default scoped VMEM; safe on v6e/v7x.
            vmem_limit_bytes=32 * 1024 * 1024,
        ),
        cost_estimate=cost,
    )(feature, *flat_params)

    return out[0]  # squeeze(1)


def init_sdf_decoder_params(key, feature_dim, hidden_dim, mlp_level, bias_on=True):
    """Deterministic init mirroring nn.Linear default (uniform +-1/sqrt(fan_in)).

    Returns list of (W, b) with W in torch layout (out, in)."""
    params = []
    dims = [feature_dim] + [hidden_dim] * mlp_level + [1]
    for i in range(len(dims) - 1):
        fan_in, fan_out = dims[i], dims[i + 1]
        key, kw, kb = jax.random.split(key, 3)
        bound = 1.0 / jnp.sqrt(jnp.float32(fan_in))
        w = jax.random.uniform(kw, (fan_out, fan_in), jnp.float32, -bound, bound)
        if bias_on:
            b = jax.random.uniform(kb, (fan_out,), jnp.float32, -bound, bound)
        else:
            b = jnp.zeros((fan_out,), jnp.float32)
        params.append((w, b))
    return params


def sdf_decoder_reference(feature, params):
    """Pure-JAX f32 reference of SDFDecoder.predict_sdf (torch (out, in) weights)."""
    h = feature
    out = None
    for k, (w, b) in enumerate(params):
        y = h @ w.T + b
        if k < len(params) - 1:
            h = jnp.maximum(y, 0.0)
        else:
            out = y
    return out[:, 0]


if __name__ == "__main__":
    # Config-equivalents (SHINEConfig): feature_dim=8, sdf_mlp_hidden_dim=32,
    # sdf_mlp_level=2, sdf_mlp_bias_on=True.
    feature_dim = 8
    hidden_dim = 32
    mlp_level = 2
    n_points = 1000  # NOT a multiple of 128 -> exercises the ragged last block

    key = jax.random.PRNGKey(0)
    key, kf = jax.random.split(key)
    feature = jax.random.normal(kf, (n_points, feature_dim), jnp.float32)

    params = init_sdf_decoder_params(key, feature_dim, hidden_dim, mlp_level)

    ref = sdf_decoder_reference(feature, params)

    # Default accuracy-safe f32 path.  Auto tile: 512 lanes -> 2 grid steps here
    # (>= 2 steps keeps both v7x TensorCores busy), last block ragged/masked.
    out_f32 = jax.block_until_ready(sdf_decoder_forward(feature, params))
    assert out_f32.shape == (n_points,), out_f32.shape
    assert jnp.allclose(out_f32, ref, atol=1e-5, rtol=1e-5), float(
        jnp.max(jnp.abs(out_f32 - ref))
    )

    # bf16 hidden layers (first matmul stays f32), small tile -> 4 ragged grid steps.
    out_bf16 = jax.block_until_ready(
        sdf_decoder_forward(feature, params, tile_n=256, compute_dtype=jnp.bfloat16)
    )
    assert out_bf16.shape == (n_points,), out_bf16.shape
    assert jnp.allclose(out_bf16, ref, atol=3e-2, rtol=3e-2), float(
        jnp.max(jnp.abs(out_bf16 - ref))
    )

    print("KERNEL_OK")
</pallas_src>

<mosaic_0001>
module attributes {stable_mosaic.version = 11 : i64} {
  func.func @_sdf_mlp_kernel(%arg0: i32, %arg1: memref<512x8xf32, #tpu.memory_space<vmem>>, %arg2: memref<32x8xf32, #tpu.memory_space<vmem>>, %arg3: memref<32x1xf32, #tpu.memory_space<vmem>>, %arg4: memref<32x32xf32, #tpu.memory_space<vmem>>, %arg5: memref<32x1xf32, #tpu.memory_space<vmem>>, %arg6: memref<1x32xf32, #tpu.memory_space<vmem>>, %arg7: memref<1x1xf32, #tpu.memory_space<vmem>>, %arg8: memref<1x512xf32, #tpu.memory_space<vmem>>) attributes {dimension_semantics = [#tpu.dimension_semantics<parallel>], iteration_bounds = array<i64: 2>, scalar_prefetch = 0 : i64, scratch_operands = 0 : i64, tpu.core_type = #tpu.core_type<tc>, window_params = [{transform_indices = @transform_0, window_bounds = array<i64: 512, 8>}, {pipeline_mode = #tpu.pipeline_mode<synchronous>, transform_indices = @transform_1, window_bounds = array<i64: 32, 8>}, {pipeline_mode = #tpu.pipeline_mode<synchronous>, transform_indices = @transform_2, window_bounds = array<i64: 32, 1>}, {pipeline_mode = #tpu.pipeline_mode<synchronous>, transform_indices = @transform_3, window_bounds = array<i64: 32, 32>}, {pipeline_mode = #tpu.pipeline_mode<synchronous>, transform_indices = @transform_4, window_bounds = array<i64: 32, 1>}, {pipeline_mode = #tpu.pipeline_mode<synchronous>, transform_indices = @transform_5, window_bounds = array<i64: 1, 32>}, {pipeline_mode = #tpu.pipeline_mode<synchronous>, transform_indices = @transform_6, window_bounds = array<i64: 1, 1>}, {transform_indices = @transform_7, window_bounds = array<i64: 1, 512>}]} {
    %c0 = arith.constant 0 : index
    %c0_0 = arith.constant 0 : index
    %0 = vector.load %arg2[%c0, %c0_0] : memref<32x8xf32, #tpu.memory_space<vmem>>, vector<32x8xf32>
    %c0_1 = arith.constant 0 : index
    %c0_2 = arith.constant 0 : index
    %1 = vector.load %arg3[%c0_1, %c0_2] : memref<32x1xf32, #tpu.memory_space<vmem>>, vector<32x1xf32>
    %c0_3 = arith.constant 0 : index
    %c0_4 = arith.constant 0 : index
    %2 = vector.load %arg1[%c0_3, %c0_4] : memref<512x8xf32, #tpu.memory_space<vmem>>, vector<512x8xf32>
    %3 = tpu.transpose %2, [1, 0] : vector<512x8xf32> -> vector<8x512xf32>
    %cst = arith.constant dense<0.000000e+00> : vector<32x512xf32>
    %4 = tpu.matmul %0, %3, %cst {dimension_numbers = #tpu.dot_dimension_numbers<[1], [0], [0], [1], [0, 0, 1, 1], [], []>} : vector<32x8xf32>, vector<8x512xf32>, vector<32x512xf32> -> vector<32x512xf32>
    %5 = vector.broadcast %1 : vector<32x1xf32> to vector<32x512xf32>
    %6 = arith.addf %4, %5 : vector<32x512xf32>
    %cst_5 = arith.constant 0.000000e+00 : f32
    %7 = vector.broadcast %cst_5 : f32 to vector<32x512xf32>
    %8 = arith.maximumf %6, %7 : vector<32x512xf32>
    %c0_6 = arith.constant 0 : index
    %c0_7 = arith.constant 0 : index
    %9 = vector.load %arg4[%c0_6, %c0_7] : memref<32x32xf32, #tpu.memory_space<vmem>>, vector<32x32xf32>
    %c0_8 = arith.constant 0 : index
    %c0_9 = arith.constant 0 : index
    %10 = vector.load %arg5[%c0_8, %c0_9] : memref<32x1xf32, #tpu.memory_space<vmem>>, vector<32x1xf32>
    %cst_10 = arith.constant dense<0.000000e+00> : vector<32x512xf32>
    %11 = tpu.matmul %9, %8, %cst_10 {dimension_numbers = #tpu.dot_dimension_numbers<[1], [0], [0], [1], [0, 0, 1, 1], [], []>} : vector<32x32xf32>, vector<32x512xf32>, vector<32x512xf32> -> vector<32x512xf32>
    %12 = vector.broadcast %10 : vector<32x1xf32> to vector<32x512xf32>
    %13 = arith.addf %11, %12 : vector<32x512xf32>
    %cst_11 = arith.constant 0.000000e+00 : f32
    %14 = vector.broadcast %cst_11 : f32 to vector<32x512xf32>
    %15 = arith.maximumf %13, %14 : vector<32x512xf32>
    %c0_12 = arith.constant 0 : index
    %c0_13 = arith.constant 0 : index
    %16 = vector.load %arg6[%c0_12, %c0_13] : memref<1x32xf32, #tpu.memory_space<vmem>>, vector<1x32xf32>
    %c0_14 = arith.constant 0 : index
    %c0_15 = arith.constant 0 : index
    %17 = vector.load %arg7[%c0_14, %c0_15] : memref<1x1xf32, #tpu.memory_space<vmem>>, vector<1x1xf32>
    %cst_16 = arith.constant dense<0.000000e+00> : vector<1x512xf32>
    %18 = tpu.matmul %16, %15, %cst_16 {dimension_numbers = #tpu.dot_dimension_numbers<[1], [0], [0], [1], [0, 0, 1, 1], [], []>} : vector<1x32xf32>, vector<32x512xf32>, vector<1x512xf32> -> vector<1x512xf32>
    %19 = vector.broadcast %17 : vector<1x1xf32> to vector<1x512xf32>
    %20 = arith.addf %18, %19 : vector<1x512xf32>
    %c0_17 = arith.constant 0 : index
    %c0_18 = arith.constant 0 : index
    %21 = vector.load %arg8[%c0_17, %c0_18] : memref<1x512xf32, #tpu.memory_space<vmem>>, vector<1x512xf32>
    tpu.vector_store %arg8[%c0_17, %c0_18], %20 {strides = array<i32>} : memref<1x512xf32, #tpu.memory_space<vmem>>, vector<1x512xf32>,
    return
  }
  func.func @transform_0(%arg0: i32) -> (i32, i32) {
    %c0_i32 = arith.constant 0 : i32
    %c0_i32_0 = arith.constant 0 : i32
    return %arg0, %c0_i32 : i32, i32
  }
  func.func @transform_1(%arg0: i32) -> (i32, i32) {
    %c0_i32 = arith.constant 0 : i32
    %c0_i32_0 = arith.constant 0 : i32
    %c0_i32_1 = arith.constant 0 : i32
    return %c0_i32, %c0_i32_0 : i32, i32
  }
  func.func @transform_2(%arg0: i32) -> (i32, i32) {
    %c0_i32 = arith.constant 0 : i32
    %c0_i32_0 = arith.constant 0 : i32
    %c0_i32_1 = arith.constant 0 : i32
    return %c0_i32, %c0_i32_0 : i32, i32
  }
  func.func @transform_3(%arg0: i32) -> (i32, i32) {
    %c0_i32 = arith.constant 0 : i32
    %c0_i32_0 = arith.constant 0 : i32
    %c0_i32_1 = arith.constant 0 : i32
    return %c0_i32, %c0_i32_0 : i32, i32
  }
  func.func @transform_4(%arg0: i32) -> (i32, i32) {
    %c0_i32 = arith.constant 0 : i32
    %c0_i32_0 = arith.constant 0 : i32
    %c0_i32_1 = arith.constant 0 : i32
    return %c0_i32, %c0_i32_0 : i32, i32
  }
  func.func @transform_5(%arg0: i32) -> (i32, i32) {
    %c0_i32 = arith.constant 0 : i32
    %c0_i32_0 = arith.constant 0 : i32
    %c0_i32_1 = arith.constant 0 : i32
    return %c0_i32, %c0_i32_0 : i32, i32
  }
  func.func @transform_6(%arg0: i32) -> (i32, i32) {
    %c0_i32 = arith.constant 0 : i32
    %c0_i32_0 = arith.constant 0 : i32
    %c0_i32_1 = arith.constant 0 : i32
    return %c0_i32, %c0_i32_0 : i32, i32
  }
  func.func @transform_7(%arg0: i32) -> (i32, i32) {
    %c0_i32 = arith.constant 0 : i32
    %c0_i32_0 = arith.constant 0 : i32
    return %c0_i32, %arg0 : i32, i32
  }
}

</mosaic_0001>

<llo_original>
// kernel: tpu_custom_call.1
$region0: #{tpu_custom_call.1}
  #allocation0 [shape = 'u32[]', space=smem, size = 0x4, offset = 0x4, fixed_abs, tag = 'smem constant byte address 0x4 - core index']
  #allocation1 [shape = 'u32[144,128]{1,0:T(1,128)}', space=vmem, size = 0x12000, scoped, tag = 'internal scratch']
  #allocation2 [shape = 'f32[1,1]{1,0:T(1,128)S(1)}', space=vmem, size = 0x200, scoped, tag = 'scoped memory for tpu_custom_call.1']
  %s0 = inlined_call_operand.vmem [shape: f32[1000,8], index: 0, kind: input, shape index: {}]
  %s1 = inlined_call_operand.vmem [shape: f32[32,8], index: 1, kind: input, shape index: {}]
  %s2 = inlined_call_operand.vmem [shape: f32[32,1], index: 2, kind: input, shape index: {}]
  %s3 = inlined_call_operand.vmem [shape: f32[32,32], index: 3, kind: input, shape index: {}]
  %s4 = inlined_call_operand.vmem [shape: f32[32,1], index: 4, kind: input, shape index: {}]
  %s5 = inlined_call_operand.vmem [shape: f32[1,32], index: 5, kind: input, shape index: {}]
  %s6 = inlined_call_operand.<no memory space> [shape: f32[1,1], index: 6, kind: input, shape index: {}]
  %s7 = inlined_call_operand.hbm [shape: f32[1,1000], index: 7, kind: output, shape index: {}]
  %s8 = sld [smem:[#allocation0]]
  $region61: #{tpu_custom_call.1} parent=0
    _
  %s10 = ssub.s32 1, %s8
  %s11 = scalar_select 0, %s10, %s8
  %v12 = vstv %s6
  %13 = vst [vmem:[#allocation2] sm:$0x1] %v12
  $region1: #{tpu_custom_call.1} parent=0
    #allocation3 [shape = 'u8[4096]{0}', space=vmem, size = 0x1000, scoped, tag = 'output window, operand 0']
    #allocation4 [shape = 's32[2]{0}', space=sflag, size = 0x8, scoped, tag = 'scoped memory for tpu_custom_call.1']
    %14 = vsyncpa [#allocation4], 0
    %s15 = scalar_lea.sflag [#allocation4], 1
    %16 = vsyncpa %s15, 0
    loop: start=0, step=1, limit=4
    $region2: #{tpu_custom_call.1} parent=1 // loop_pre_header
      _
    $region3: #{tpu_custom_call.1} parent=1 // loop_header
      %s18 = sphi 0, %s22
      %p19 = scmp.ge.s32.totalorder %s18, 4
      %s28 = sphi 0, %s30
      %s31 = sphi 0, %s28
      %s32 = sphi 0, %s31
      %s48 = sphi 0, %s32
      %s52 = sphi 0, %s52
      %s54 = sphi 0, %s52
      %s55 = sphi 0, %s54
      %s69 = sphi 0, %s55
      %s73 = sphi 0, %s73
      %s75 = sphi 0, %s73
      %s76 = sphi 0, %s75
      %s90 = sphi 0, %s76
      %s94 = sphi 0, %s94
      %s96 = sphi 0, %s94
      %s97 = sphi 0, %s96
      %s111 = sphi 0, %s97
      %s115 = sphi 0, %s115
      %s117 = sphi 0, %s115
      %s118 = sphi 0, %s117
      %s132 = sphi 0, %s118
      %s136 = sphi 0, %s136
      %s138 = sphi 0, %s136
      %s139 = sphi 0, %s138
      %s153 = sphi 0, %s139
      %s157 = sphi 0, %s157
      %s159 = sphi 0, %s157
      %s160 = sphi 0, %s159
      %s174 = sphi 0, %s160
      %s180 = sphi 0, %s182
      %s183 = sphi 0, %s180
      %s184 = sphi 0, %s183
      %s200 = sphi 0, %s184
    $region4: #{tpu_custom_call.1} parent=1 // loop_header_branch
      %21 = sbr.rel (%p19) target = $region8
    $region5: #{tpu_custom_call.1} parent=1 // loop_body
      %s23 = ssub.s32 %s18, 1
      %s24 = ssub.s32 %s18, 2
      %s25 = sadd.s32 %s18, 1
      %s26 = ssub.s32 %s18, %s25
      %p27 = scmp.eq.s32.totalorder %s26, 0
      %s29 = sadd.s32 %s28, 1
      %s30 = scalar_select %p27, %s28, %s29
      %p33 = pneg %p27
      %p34 = scmp.eq.s32.totalorder %s18, 1
      %p35 = por %p33, %p34
      %p36 = scmp.ne.s32.totalorder %s28, %s31
      %p37 = scmp.eq.s32.totalorder %s18, 0
      %p38 = por %p36, %p37
      %p39 = scmp.ne.s32.totalorder %s28, %s31
      %p40 = scmp.eq.s32.totalorder %s23, 1
      %p41 = por %p39, %p40
      %p42 = scmp.ne.s32.totalorder %s31, %s32
      %p43 = scmp.eq.s32.totalorder %s23, 0
      %p44 = por %p42, %p43
      %p45 = scmp.ne.s32.totalorder %s31, %s32
      %p46 = scmp.eq.s32.totalorder %s24, 1
      %p47 = por %p45, %p46
      %p49 = scmp.ne.s32.totalorder %s32, %s48
      %p50 = scmp.eq.s32.totalorder %s24, 0
      %p51 = por %p49, %p50
      %s53 = sadd.s32 %s52, 1
      %p56 = scmp.eq.s32.totalorder %s18, 1
      %p57 = scmp.ne.s32.totalorder %s52, %s54
      %p58 = scmp.eq.s32.totalorder %s18, 0
      %p59 = por %p57, %p58
      %p60 = scmp.ne.s32.totalorder %s52, %s54
      %p61 = scmp.eq.s32.totalorder %s23, 1
      %p62 = por %p60, %p61
      %p63 = scmp.ne.s32.totalorder %s54, %s55
      %p64 = scmp.eq.s32.totalorder %s23, 0
      %p65 = por %p63, %p64
      %p66 = scmp.ne.s32.totalorder %s54, %s55
      %p67 = scmp.eq.s32.totalorder %s24, 1
      %p68 = por %p66, %p67
      %p70 = scmp.ne.s32.totalorder %s55, %s69
      %p71 = scmp.eq.s32.totalorder %s24, 0
      %p72 = por %p70, %p71
      %s74 = sadd.s32 %s73, 1
      %p77 = scmp.eq.s32.totalorder %s18, 1
      %p78 = scmp.ne.s32.totalorder %s73, %s75
      %p79 = scmp.eq.s32.totalorder %s18, 0
      %p80 = por %p78, %p79
      %p81 = scmp.ne.s32.totalorder %s73, %s75
      %p82 = scmp.eq.s32.totalorder %s23, 1
      %p83 = por %p81, %p82
      %p84 = scmp.ne.s32.totalorder %s75, %s76
      %p85 = scmp.eq.s32.totalorder %s23, 0
      %p86 = por %p84, %p85
      %p87 = scmp.ne.s32.totalorder %s75, %s76
      %p88 = scmp.eq.s32.totalorder %s24, 1
      %p89 = por %p87, %p88
      %p91 = scmp.ne.s32.totalorder %s76, %s90
      %p92 = scmp.eq.s32.totalorder %s24, 0
      %p93 = por %p91, %p92
      %s95 = sadd.s32 %s94, 1
      %p98 = scmp.eq.s32.totalorder %s18, 1
      %p99 = scmp.ne.s32.totalorder %s94, %s96
      %p100 = scmp.eq.s32.totalorder %s18, 0
      %p101 = por %p99, %p100
      %p102 = scmp.ne.s32.totalorder %s94, %s96
      %p103 = scmp.eq.s32.totalorder %s23, 1
      %p104 = por %p102, %p103
      %p105 = scmp.ne.s32.totalorder %s96, %s97
      %p106 = scmp.eq.s32.totalorder %s23, 0
      %p107 = por %p105, %p106
      %p108 = scmp.ne.s32.totalorder %s96, %s97
      %p109 = scmp.eq.s32.totalorder %s24, 1
      %p110 = por %p108, %p109
      %p112 = scmp.ne.s32.totalorder %s97, %s111
      %p113 = scmp.eq.s32.totalorder %s24, 0
      %p114 = por %p112, %p113
      %s116 = sadd.s32 %s115, 1
      %p119 = scmp.eq.s32.totalorder %s18, 1
      %p120 = scmp.ne.s32.totalorder %s115, %s117
      %p121 = scmp.eq.s32.totalorder %s18, 0
      %p122 = por %p120, %p121
      %p123 = scmp.ne.s32.totalorder %s115, %s117
      %p124 = scmp.eq.s32.totalorder %s23, 1
      %p125 = por %p123, %p124
      %p126 = scmp.ne.s32.totalorder %s117, %s118
      %p127 = scmp.eq.s32.totalorder %s23, 0
      %p128 = por %p126, %p127
      %p129 = scmp.ne.s32.totalorder %s117, %s118
      %p130 = scmp.eq.s32.totalorder %s24, 1
      %p131 = por %p129, %p130
      %p133 = scmp.ne.s32.totalorder %s118, %s132
      %p134 = scmp.eq.s32.totalorder %s24, 0
      %p135 = por %p133, %p134
      %s137 = sadd.s32 %s136, 1
      %p140 = scmp.eq.s32.totalorder %s18, 1
      %p141 = scmp.ne.s32.totalorder %s136, %s138
      %p142 = scmp.eq.s32.totalorder %s18, 0
      %p143 = por %p141, %p142
      %p144 = scmp.ne.s32.totalorder %s136, %s138
      %p145 = scmp.eq.s32.totalorder %s23, 1
      %p146 = por %p144, %p145
      %p147 = scmp.ne.s32.totalorder %s138, %s139
      %p148 = scmp.eq.s32.totalorder %s23, 0
      %p149 = por %p147, %p148
      %p150 = scmp.ne.s32.totalorder %s138, %s139
      %p151 = scmp.eq.s32.totalorder %s24, 1
      %p152 = por %p150, %p151
      %p154 = scmp.ne.s32.totalorder %s139, %s153
      %p155 = scmp.eq.s32.totalorder %s24, 0
      %p156 = por %p154, %p155
      %s158 = sadd.s32 %s157, 1
      %p161 = scmp.eq.s32.totalorder %s18, 1
      %p162 = scmp.ne.s32.totalorder %s157, %s159
      %p163 = scmp.eq.s32.totalorder %s18, 0
      %p164 = por %p162, %p163
      %p165 = scmp.ne.s32.totalorder %s157, %s159
      %p166 = scmp.eq.s32.totalorder %s23, 1
      %p167 = por %p165, %p166
      %p168 = scmp.ne.s32.totalorder %s159, %s160
      %p169 = scmp.eq.s32.totalorder %s23, 0
      %p170 = por %p168, %p169
      %p171 = scmp.ne.s32.totalorder %s159, %s160
      %p172 = scmp.eq.s32.totalorder %s24, 1
      %p173 = por %p171, %p172
      %p175 = scmp.ne.s32.totalorder %s160, %s174
      %p176 = scmp.eq.s32.totalorder %s24, 0
      %p177 = por %p175, %p176
      %s178 = ssub.s32 %s18, %s25
      %p179 = scmp.eq.s32.totalorder %s178, 0
      %s181 = sadd.s32 %s180, 1
      %s182 = scalar_select %p179, %s180, %s181
      %p185 = pneg %p179
      %p186 = scmp.eq.s32.totalorder %s18, 1
      %p187 = por %p185, %p186
      %p188 = scmp.ne.s32.totalorder %s180, %s183
      %p189 = scmp.eq.s32.totalorder %s18, 0
      %p190 = por %p188, %p189
      %p191 = scmp.ne.s32.totalorder %s180, %s183
      %p192 = scmp.eq.s32.totalorder %s23, 1
      %p193 = por %p191, %p192
      %p194 = scmp.ne.s32.totalorder %s183, %s184
      %p195 = scmp.eq.s32.totalorder %s23, 0
      %p196 = por %p194, %p195
      %p197 = scmp.ne.s32.totalorder %s183, %s184
      %p198 = scmp.eq.s32.totalorder %s24, 1
      %p199 = por %p197, %p198
      %p201 = scmp.ne.s32.totalorder %s184, %s200
      %p202 = scmp.eq.s32.totalorder %s24, 0
      %p203 = por %p201, %p202
      %p204 = scmp.le.s32.totalorder 1, %s18
      %p205 = scmp.lt.s32.totalorder %s18, 3
      %p206 = pnand %p204, %p205
      %p207 = pneg %p206
      // Predicated region
      $region9: #{tpu_custom_call.1} parent=5 // pred_check
        _
      $region10: #{tpu_custom_call.1} parent=5 // pred_check_branch
        %209 = sbr.rel (%p206) target = $region12
      $region11: #{tpu_custom_call.1} parent=5 // pred_region
        %s210 = ssub.s32 %s18, 1
        // Predicated region
        $region13: #{tpu_custom_call.1} parent=11 // pred_check
          %p211 = pneg %p65
        $region14: #{tpu_custom_call.1} parent=11 // pred_check_branch
          %213 = sbr.rel (%p211) target = $region16
        $region15: #{tpu_custom_call.1} parent=11 // pred_region
          _
        $region16: #{tpu_custom_call.1} parent=11 // pred_fallthru
          _
        // Predicated region
        $region17: #{tpu_custom_call.1} parent=11 // pred_check
          %p214 = pneg %p86
        $region18: #{tpu_custom_call.1} parent=11 // pred_check_branch
          %216 = sbr.rel (%p214) target = $region20
        $region19: #{tpu_custom_call.1} parent=11 // pred_region
          _
        $region20: #{tpu_custom_call.1} parent=11 // pred_fallthru
          _
        // Predicated region
        $region21: #{tpu_custom_call.1} parent=11 // pred_check
          %p217 = pneg %p107
        $region22: #{tpu_custom_call.1} parent=11 // pred_check_branch
          %219 = sbr.rel (%p217) target = $region24
        $region23: #{tpu_custom_call.1} parent=11 // pred_region
          _
        $region24: #{tpu_custom_call.1} parent=11 // pred_fallthru
          _
        // Predicated region
        $region25: #{tpu_custom_call.1} parent=11 // pred_check
          %p220 = pneg %p128
        $region26: #{tpu_custom_call.1} parent=11 // pred_check_branch
          %222 = sbr.rel (%p220) target = $region28
        $region27: #{tpu_custom_call.1} parent=11 // pred_region
          _
        $region28: #{tpu_custom_call.1} parent=11 // pred_fallthru
          _
        // Predicated region
        $region29: #{tpu_custom_call.1} parent=11 // pred_check
          %p223 = pneg %p149
        $region30: #{tpu_custom_call.1} parent=11 // pred_check_branch
          %225 = sbr.rel (%p223) target = $region32
        $region31: #{tpu_custom_call.1} parent=11 // pred_region
          _
        $region32: #{tpu_custom_call.1} parent=11 // pred_fallthru
          _
        // Predicated region
        $region33: #{tpu_custom_call.1} parent=11 // pred_check
          %p226 = pneg %p170
        $region34: #{tpu_custom_call.1} parent=11 // pred_check_branch
          %228 = sbr.rel (%p226) target = $region36
        $region35: #{tpu_custom_call.1} parent=11 // pred_region
          _
        $region36: #{tpu_custom_call.1} parent=11 // pred_fallthru
          _
      $region12: #{tpu_custom_call.1} parent=5 // pred_fallthru
        _
      %p229 = scmp.lt.s32.totalorder %s18, 2
      // Predicated region
      $region37: #{tpu_custom_call.1} parent=5 // pred_check
        %p230 = pneg %p229
      $region38: #{tpu_custom_call.1} parent=5 // pred_check_branch
        %232 = sbr.rel (%p230) target = $region40
      $region39: #{tpu_custom_call.1} parent=5 // pred_region
        // Predicated region
        $region41: #{tpu_custom_call.1} parent=39 // pred_check
          %p233 = pneg %p38
        $region42: #{tpu_custom_call.1} parent=39 // pred_check_branch
          %235 = sbr.rel (%p233) target = $region44
        $region43: #{tpu_custom_call.1} parent=39 // pred_region
          %s236 = smul.u32 64, %s18
          %s237 = ssub.s32 125, %s236
          %p238 = scmp.lt.s32.totalorder %s237, 64
          %s239 = scalar_select %p238, %s237, 64
          %s240 = smul.u32 128, %s239
          %p241 = scmp.lt.s32.totalorder %s236, 124
          %s242 = scalar_select %p241, %s236, 124
          %s243 = smul.addr %s242, 8
          %s244 = scalar_lea.vmem %s0, %s243
          %s245 = smul.u32 64, %s18
          %s246 = ssub.s32 125, %s245
          %p247 = scmp.lt.s32.totalorder %s246, 64
          %s248 = scalar_select %p247, %s246, 64
          %s249 = smul.u32 128, %s248
        $region44: #{tpu_custom_call.1} parent=39 // pred_fallthru
          _
      $region40: #{tpu_custom_call.1} parent=5 // pred_fallthru
        _
      %p250 = scmp.le.s32.totalorder 1, %s18
      %p251 = scmp.lt.s32.totalorder %s18, 3
      %p252 = pnand %p250, %p251
      %p253 = pneg %p252
      // Predicated region
      $region45: #{tpu_custom_call.1} parent=5 // pred_check
        _
      $region46: #{tpu_custom_call.1} parent=5 // pred_check_branch
        %255 = sbr.rel (%p252) target = $region48
      $region47: #{tpu_custom_call.1} parent=5 // pred_region
        %s256 = ssub.s32 %s18, 1
        %s257 = smul.u32 64, %s23
        %s258 = ssub.s32 125, %s257
        %p259 = scmp.lt.s32.totalorder %s258, 64
        %s260 = scalar_select %p259, %s258, 64
        %s261 = smul.u32 128, %s260
        %p262 = scmp.lt.s32.totalorder %s257, 124
        %s263 = scalar_select %p262, %s257, 124
        %s264 = smul.addr %s263, 8
        %s265 = scalar_lea.vmem %s0, %s264
        %p266 = pneg %p44
        %p267 = pneg %p41
        %p268 = pneg %p65
        %p269 = pneg %p62
        %p270 = pneg %p86
        %p271 = pneg %p83
        %p272 = pneg %p107
        %p273 = pneg %p104
        %p274 = pneg %p128
        %p275 = pneg %p125
        %p276 = pneg %p149
        %p277 = pneg %p146
        %p278 = pneg %p170
        %p279 = pneg %p167
        %p280 = pneg %p196
        %p281 = pneg %p193
        %s282 = sand.u32 %s183, 1
        %s283 = scalar_lea.sflag [#allocation4], %s282
        %s284 = sand.u32 %s183, 1
        %s285 = smul.addr %s284, 4
        %s286 = scalar_lea.vmem [#allocation3], %s285
        %s287 = smul.u32 64, %s23
        %s288 = ssub.s32 125, %s287
        %p289 = scmp.lt.s32.totalorder %s288, 64
        %s290 = scalar_select %p289, %s288, 64
        %s291 = smul.u32 128, %s290
        %p292 = scmp.lt.s32.totalorder %s287, 124
        %s293 = scalar_select %p292, %s287, 124
        %s294 = smul.addr %s293, 8
        %s295 = scalar_lea.vmem %s0, %s294
        %s296 = smul.u32 64, %s23
        %s297 = ssub.s32 125, %s296
        %p298 = scmp.lt.s32.totalorder %s297, 64
        %s299 = scalar_select %p298, %s297, 64
        %s300 = smul.u32 128, %s299
        %s301 = smul.u32 4, %s23
        %v302 = vld [vmem:[%s1] sm:$0xff]
        %v303 = vld [vmem:[%s1 + $0x8] sm:$0xff]
        %v304 = vld [vmem:[%s1 + $0x10] sm:$0xff]
        %v305 = vld [vmem:[%s1 + $0x18] sm:$0xff]
        %v306 = vld [vmem:[%s2] sm:$0xff]
        %v307 = vld [vmem:[%s2 + $0x8] sm:$0xff]
        %v308 = vld [vmem:[%s2 + $0x10] sm:$0xff]
        %v309 = vld [vmem:[%s2 + $0x18] sm:$0xff]
        %v310 = vld [vmem:[%s295] sm:$0xff]
        %v311 = vld [vmem:[%s295 + $0x8] sm:$0xff]
        %v312 = vld [vmem:[%s295 + $0x10] sm:$0xff]
        %v313 = vld [vmem:[%s295 + $0x18] sm:$0xff]
        %v314 = vld [vmem:[%s295 + $0x20] sm:$0xff]
        %v315 = vld [vmem:[%s295 + $0x28] sm:$0xff]
        %v316 = vld [vmem:[%s295 + $0x30] sm:$0xff]
        %v317 = vld [vmem:[%s295 + $0x38] sm:$0xff]
        %v318 = vld [vmem:[%s295 + $0x40] sm:$0xff]
        %v319 = vld [vmem:[%s295 + $0x48] sm:$0xff]
        %v320 = vld [vmem:[%s295 + $0x50] sm:$0xff]
        %v321 = vld [vmem:[%s295 + $0x58] sm:$0xff]
        %v322 = vld [vmem:[%s295 + $0x60] sm:$0xff]
        %v323 = vld [vmem:[%s295 + $0x68] sm:$0xff]
        %v324 = vld [vmem:[%s295 + $0x70] sm:$0xff]
        %v325 = vld [vmem:[%s295 + $0x78] sm:$0xff]
        %v326 = vld [vmem:[%s295 + $0x80] sm:$0xff]
        %v327 = vld [vmem:[%s295 + $0x88] sm:$0xff]
        %v328 = vld [vmem:[%s295 + $0x90] sm:$0xff]
        %v329 = vld [vmem:[%s295 + $0x98] sm:$0xff]
        %v330 = vld [vmem:[%s295 + $0xa0] sm:$0xff]
        %v331 = vld [vmem:[%s295 + $0xa8] sm:$0xff]
        %v332 = vld [vmem:[%s295 + $0xb0] sm:$0xff]
        %v333 = vld [vmem:[%s295 + $0xb8] sm:$0xff]
        %v334 = vld [vmem:[%s295 + $0xc0] sm:$0xff]
        %v335 = vld [vmem:[%s295 + $0xc8] sm:$0xff]
        %v336 = vld [vmem:[%s295 + $0xd0] sm:$0xff]
        %v337 = vld [vmem:[%s295 + $0xd8] sm:$0xff]
        %v338 = vld [vmem:[%s295 + $0xe0] sm:$0xff]
        %v339 = vld [vmem:[%s295 + $0xe8] sm:$0xff]
        %v340 = vld [vmem:[%s295 + $0xf0] sm:$0xff]
        %v341 = vld [vmem:[%s295 + $0xf8] sm:$0xff]
        %v342 = vld [vmem:[%s295 + $0x100] sm:$0xff]
        %v343 = vld [vmem:[%s295 + $0x108] sm:$0xff]
        %v344 = vld [vmem:[%s295 + $0x110] sm:$0xff]
        %v345 = vld [vmem:[%s295 + $0x118] sm:$0xff]
        %v346 = vld [vmem:[%s295 + $0x120] sm:$0xff]
        %v347 = vld [vmem:[%s295 + $0x128] sm:$0xff]
        %v348 = vld [vmem:[%s295 + $0x130] sm:$0xff]
        %v349 = vld [vmem:[%s295 + $0x138] sm:$0xff]
        %v350 = vld [vmem:[%s295 + $0x140] sm:$0xff]
        %v351 = vld [vmem:[%s295 + $0x148] sm:$0xff]
        %v352 = vld [vmem:[%s295 + $0x150] sm:$0xff]
        %v353 = vld [vmem:[%s295 + $0x158] sm:$0xff]
        %v354 = vld [vmem:[%s295 + $0x160] sm:$0xff]
        %v355 = vld [vmem:[%s295 + $0x168] sm:$0xff]
        %v356 = vld [vmem:[%s295 + $0x170] sm:$0xff]
        %v357 = vld [vmem:[%s295 + $0x178] sm:$0xff]
        %v358 = vld [vmem:[%s295 + $0x180] sm:$0xff]
        %v359 = vld [vmem:[%s295 + $0x188] sm:$0xff]
        %v360 = vld [vmem:[%s295 + $0x190] sm:$0xff]
        %v361 = vld [vmem:[%s295 + $0x198] sm:$0xff]
        %v362 = vld [vmem:[%s295 + $0x1a0] sm:$0xff]
        %v363 = vld [vmem:[%s295 + $0x1a8] sm:$0xff]
        %v364 = vld [vmem:[%s295 + $0x1b0] sm:$0xff]
        %v365 = vld [vmem:[%s295 + $0x1b8] sm:$0xff]
        %v366 = vld [vmem:[%s295 + $0x1c0] sm:$0xff]
        %v367 = vld [vmem:[%s295 + $0x1c8] sm:$0xff]
        %v368 = vld [vmem:[%s295 + $0x1d0] sm:$0xff]
        %v369 = vld [vmem:[%s295 + $0x1d8] sm:$0xff]
        %v370 = vld [vmem:[%s295 + $0x1e0] sm:$0xff]
        %v371 = vld [vmem:[%s295 + $0x1e8] sm:$0xff]
        %v372 = vld [vmem:[%s295 + $0x1f0] sm:$0xff]
        %v373 = vld [vmem:[%s295 + $0x1f8] sm:$0xff]
        %375 = vset.pattern.permute.xlu0 0
        %376 = vperm.xlu0 %375, %v306
        %v377 = vpop.permute.xlu0 %376
        %380 = vset.pattern.permute.xlu0 0
        %381 = vperm.xlu0 %380, %v307
        %v382 = vpop.permute.xlu0 %381
        %385 = vset.pattern.permute.xlu0 0
        %386 = vperm.xlu0 %385, %v308
        %v387 = vpop.permute.xlu0 %386
        %390 = vset.pattern.permute.xlu0 0
        %391 = vperm.xlu0 %390, %v309
        %v392 = vpop.permute.xlu0 %391
        %vm394 = vcmask 64512
        %v396 = vsel %vm394, %v302, 0
        %v399 = vsel %vm394, %v303, 0
        %v402 = vsel %vm394, %v304, 0
        %v405 = vsel %vm394, %v305, 0
        %v408 = vsel %vm394, %v310, 0
        %v411 = vsel %vm394, %v311, 0
        %v414 = vsel %vm394, %v312, 0
        %v417 = vsel %vm394, %v313, 0
        %v420 = vsel %vm394, %v314, 0
        %v423 = vsel %vm394, %v315, 0
        %v426 = vsel %vm394, %v316, 0
        %v429 = vsel %vm394, %v317, 0
        %v432 = vsel %vm394, %v318, 0
        %v435 = vsel %vm394, %v319, 0
        %v438 = vsel %vm394, %v320, 0
        %v441 = vsel %vm394, %v321, 0
        %v444 = vsel %vm394, %v322, 0
        %v447 = vsel %vm394, %v323, 0
        %v450 = vsel %vm394, %v324, 0
        %v453 = vsel %vm394, %v325, 0
        %v456 = vsel %vm394, %v326, 0
        %v459 = vsel %vm394, %v327, 0
        %v462 = vsel %vm394, %v328, 0
        %v465 = vsel %vm394, %v329, 0
        %v468 = vsel %vm394, %v330, 0
        %v471 = vsel %vm394, %v331, 0
        %v474 = vsel %vm394, %v332, 0
        %v477 = vsel %vm394, %v333, 0
        %v480 = vsel %vm394, %v334, 0
        %v483 = vsel %vm394, %v335, 0
        %v486 = vsel %vm394, %v336, 0
        %v489 = vsel %vm394, %v337, 0
        %v492 = vsel %vm394, %v338, 0
        %v495 = vsel %vm394, %v339, 0
        %v498 = vsel %vm394, %v340, 0
        %v501 = vsel %vm394, %v341, 0
        %v504 = vsel %vm394, %v342, 0
        %v507 = vsel %vm394, %v343, 0
        %v510 = vsel %vm394, %v344, 0
        %v513 = vsel %vm394, %v345, 0
        %v516 = vsel %vm394, %v346, 0
        %v519 = vsel %vm394, %v347, 0
        %v522 = vsel %vm394, %v348, 0
        %v525 = vsel %vm394, %v349, 0
        %v528 = vsel %vm394, %v350, 0
        %v531 = vsel %vm394, %v351, 0
        %v534 = vsel %vm394, %v352, 0
        %v537 = vsel %vm394, %v353, 0
        %v540 = vsel %vm394, %v354, 0
        %v543 = vsel %vm394, %v355, 0
        %v546 = vsel %vm394, %v356, 0
        %v549 = vsel %vm394, %v357, 0
        %v552 = vsel %vm394, %v358, 0
        %v555 = vsel %vm394, %v359, 0
        %v558 = vsel %vm394, %v360, 0
        %v561 = vsel %vm394, %v361, 0
        %v564 = vsel %vm394, %v362, 0
        %v567 = vsel %vm394, %v363, 0
        %v570 = vsel %vm394, %v364, 0
        %v573 = vsel %vm394, %v365, 0
        %v576 = vsel %vm394, %v366, 0
        %v579 = vsel %vm394, %v367, 0
        %v582 = vsel %vm394, %v368, 0
        %v585 = vsel %vm394, %v369, 0
        %v588 = vsel %vm394, %v370, 0
        %v591 = vsel %vm394, %v371, 0
        %v594 = vsel %vm394, %v372, 0
        %v597 = vsel %vm394, %v373, 0
        %599 = vmatprep.subr.mxu0 0.0
        %600 = vmatpush1.xpose.msra.mxu0 %v453
        %601 = vmatprep.subr.mxu0 0.0
        %602 = vmatpush1.xpose.msra.mxu0 %v450
        %603 = vmatprep.subr.mxu0 0.0
        %604 = vmatpush1.xpose.msra.mxu0 %v447
        %605 = vmatprep.subr.mxu0 0.0
        %606 = vmatpush1.xpose.msra.mxu0 %v444
        %607 = vmatprep.subr.mxu0 0.0
        %608 = vmatpush1.xpose.msra.mxu0 %v441
        %609 = vmatprep.subr.mxu0 0.0
        %610 = vmatpush1.xpose.msra.mxu0 %v438
        %611 = vmatprep.subr.mxu0 0.0
        %612 = vmatpush1.xpose.msra.mxu0 %v435
        %613 = vmatprep.subr.mxu0 0.0
        %614 = vmatpush1.xpose.msra.mxu0 %v432
        %615 = vmatprep.subr.mxu0 0.0
        %616 = vmatpush1.xpose.msra.mxu0 %v429
        %617 = vmatprep.subr.mxu0 0.0
        %618 = vmatpush1.xpose.msra.mxu0 %v426
        %619 = vmatprep.subr.mxu0 0.0
        %620 = vmatpush1.xpose.msra.mxu0 %v423
        %621 = vmatprep.subr.mxu0 0.0
        %622 = vmatpush1.xpose.msra.mxu0 %v420
        %623 = vmatprep.subr.mxu0 0.0
        %624 = vmatpush1.xpose.msra.mxu0 %v417
        %625 = vmatprep.subr.mxu0 0.0
        %626 = vmatpush1.xpose.msra.mxu0 %v414
        %627 = vmatprep.subr.mxu0 0.0
        %628 = vmatpush1.xpose.msra.mxu0 %v411
        %629 = vmatprep.subr.mxu0 0.0
        %630 = vmatpush1.xpose.msra.mxu0 %v408
        %631 = vmatprep.subr.mxu0 0.0
        %632 = vmatpush2.xpose.msra.mxu0 %v501
        %633 = vmatprep.subr.mxu0 0.0
        %634 = vmatpush2.xpose.msra.mxu0 %v498
        %635 = vmatprep.subr.mxu0 0.0
        %636 = vmatpush2.xpose.msra.mxu0 %v495
        %637 = vmatprep.subr.mxu0 0.0
        %638 = vmatpush2.xpose.msra.mxu0 %v492
        %639 = vmatprep.subr.mxu0 0.0
        %640 = vmatpush2.xpose.msra.mxu0 %v489
        %641 = vmatprep.subr.mxu0 0.0
        %642 = vmatpush2.xpose.msra.mxu0 %v486
        %643 = vmatprep.subr.mxu0 0.0
        %644 = vmatpush2.xpose.msra.mxu0 %v483
        %645 = vmatprep.subr.mxu0 0.0
        %646 = vmatpush2.xpose.msra.mxu0 %v480
        %647 = vmatprep.subr.mxu0 0.0
        %648 = vmatpush2.xpose.msra.mxu0 %v477
        %649 = vmatprep.subr.mxu0 0.0
        %650 = vmatpush2.xpose.msra.mxu0 %v474
        %651 = vmatprep.subr.mxu0 0.0
        %652 = vmatpush2.xpose.msra.mxu0 %v471
        %653 = vmatprep.subr.mxu0 0.0
        %654 = vmatpush2.xpose.msra.mxu0 %v468
        %655 = vmatprep.subr.mxu0 0.0
        %656 = vmatpush2.xpose.msra.mxu0 %v465
        %657 = vmatprep.subr.mxu0 0.0
        %658 = vmatpush2.xpose.msra.mxu0 %v462
        %659 = vmatprep.subr.mxu0 0.0
        %660 = vmatpush2.xpose.msra.mxu0 %v459
        %661 = vmatprep.subr.mxu0 0.0
        %662 = vmatpush2.xpose.msra.mxu0 %v456
        %663 = vmatprep.mubr.f32.mxu0 0.0
        %664 = vmatmul.mubr.f32.gmra.mxu0 %v396
        %v665 = vpop.f32.mrf.mxu0
        %v666 = vadd.f32 %v377, %v665
        %v667 = vpop.f32.mrf.mxu0
        %v668 = vadd.f32 %v377, %v667
        %669 = vmatprep.mubr.f32.mxu0 0.0
        %670 = vmatmul.mubr.f32.gmra.mxu0 %v399
        %v671 = vpop.f32.mrf.mxu0
        %v672 = vadd.f32 %v382, %v671
        %v673 = vpop.f32.mrf.mxu0
        %v674 = vadd.f32 %v382, %v673
        %675 = vmatprep.mubr.f32.mxu0 0.0
        %676 = vmatmul.mubr.f32.gmra.mxu0 %v402
        %v677 = vpop.f32.mrf.mxu0
        %v678 = vadd.f32 %v387, %v677
        %v679 = vpop.f32.mrf.mxu0
        %v680 = vadd.f32 %v387, %v679
        %681 = vmatprep.mubr.f32.mxu0 0.0
        %682 = vmatmul.mubr.f32.gmra.mxu0 %v405
        %v683 = vpop.f32.mrf.mxu0
        %v684 = vadd.f32 %v392, %v683
        %v685 = vpop.f32.mrf.mxu0
        %v686 = vadd.f32 %v392, %v685
        %687 = vdwg.mxu0
        %688 = vmatprep.subr.mxu0 0.0
        %689 = vmatpush1.xpose.msra.mxu0 %v549
        %690 = vmatprep.subr.mxu0 0.0
        %691 = vmatpush1.xpose.msra.mxu0 %v546
        %692 = vmatprep.subr.mxu0 0.0
        %693 = vmatpush1.xpose.msra.mxu0 %v543
        %694 = vmatprep.subr.mxu0 0.0
        %695 = vmatpush1.xpose.msra.mxu0 %v540
        %696 = vmatprep.subr.mxu0 0.0
        %697 = vmatpush1.xpose.msra.mxu0 %v537
        %698 = vmatprep.subr.mxu0 0.0
        %699 = vmatpush1.xpose.msra.mxu0 %v534
        %700 = vmatprep.subr.mxu0 0.0
        %701 = vmatpush1.xpose.msra.mxu0 %v531
        %702 = vmatprep.subr.mxu0 0.0
        %703 = vmatpush1.xpose.msra.mxu0 %v528
        %704 = vmatprep.subr.mxu0 0.0
        %705 = vmatpush1.xpose.msra.mxu0 %v525
        %706 = vmatprep.subr.mxu0 0.0
        %707 = vmatpush1.xpose.msra.mxu0 %v522
        %708 = vmatprep.subr.mxu0 0.0
        %709 = vmatpush1.xpose.msra.mxu0 %v519
        %710 = vmatprep.subr.mxu0 0.0
        %711 = vmatpush1.xpose.msra.mxu0 %v516
        %712 = vmatprep.subr.mxu0 0.0
        %713 = vmatpush1.xpose.msra.mxu0 %v513
        %714 = vmatprep.subr.mxu0 0.0
        %715 = vmatpush1.xpose.msra.mxu0 %v510
        %716 = vmatprep.subr.mxu0 0.0
        %717 = vmatpush1.xpose.msra.mxu0 %v507
        %718 = vmatprep.subr.mxu0 0.0
        %719 = vmatpush1.xpose.msra.mxu0 %v504
        %720 = vmatprep.subr.mxu0 0.0
        %721 = vmatpush2.xpose.msra.mxu0 %v597
        %722 = vmatprep.subr.mxu0 0.0
        %723 = vmatpush2.xpose.msra.mxu0 %v594
        %724 = vmatprep.subr.mxu0 0.0
        %725 = vmatpush2.xpose.msra.mxu0 %v591
        %726 = vmatprep.subr.mxu0 0.0
        %727 = vmatpush2.xpose.msra.mxu0 %v588
        %728 = vmatprep.subr.mxu0 0.0
        %729 = vmatpush2.xpose.msra.mxu0 %v585
        %730 = vmatprep.subr.mxu0 0.0
        %731 = vmatpush2.xpose.msra.mxu0 %v582
        %732 = vmatprep.subr.mxu0 0.0
        %733 = vmatpush2.xpose.msra.mxu0 %v579
        %734 = vmatprep.subr.mxu0 0.0
        %735 = vmatpush2.xpose.msra.mxu0 %v576
        %736 = vmatprep.subr.mxu0 0.0
        %737 = vmatpush2.xpose.msra.mxu0 %v573
        %738 = vmatprep.subr.mxu0 0.0
        %739 = vmatpush2.xpose.msra.mxu0 %v570
        %740 = vmatprep.subr.mxu0 0.0
        %741 = vmatpush2.xpose.msra.mxu0 %v567
        %742 = vmatprep.subr.mxu0 0.0
        %743 = vmatpush2.xpose.msra.mxu0 %v564
        %744 = vmatprep.subr.mxu0 0.0
        %745 = vmatpush2.xpose.msra.mxu0 %v561
        %746 = vmatprep.subr.mxu0 0.0
        %747 = vmatpush2.xpose.msra.mxu0 %v558
        %748 = vmatprep.subr.mxu0 0.0
        %749 = vmatpush2.xpose.msra.mxu0 %v555
        %750 = vmatprep.subr.mxu0 0.0
        %751 = vmatpush2.xpose.msra.mxu0 %v552
        %752 = vmatprep.mubr.f32.mxu0 0.0
        %753 = vmatmul.mubr.f32.gmra.mxu0 %v396
        %v754 = vpop.f32.mrf.mxu0
        %v755 = vadd.f32 %v377, %v754
        %v756 = vpop.f32.mrf.mxu0
        %v757 = vadd.f32 %v377, %v756
        %758 = vmatprep.mubr.f32.mxu0 0.0
        %759 = vmatmul.mubr.f32.gmra.mxu0 %v399
        %v760 = vpop.f32.mrf.mxu0
        %v761 = vadd.f32 %v382, %v760
        %v762 = vpop.f32.mrf.mxu0
        %v763 = vadd.f32 %v382, %v762
        %764 = vmatprep.mubr.f32.mxu0 0.0
        %765 = vmatmul.mubr.f32.gmra.mxu0 %v402
        %v766 = vpop.f32.mrf.mxu0
        %v767 = vadd.f32 %v387, %v766
        %v768 = vpop.f32.mrf.mxu0
        %v769 = vadd.f32 %v387, %v768
        %770 = vmatprep.mubr.f32.mxu0 0.0
        %771 = vmatmul.mubr.f32.gmra.mxu0 %v405
        %v772 = vpop.f32.mrf.mxu0
        %v773 = vadd.f32 %v392, %v772
        %v774 = vpop.f32.mrf.mxu0
        %v775 = vadd.f32 %v392, %v774
        %776 = vdwg.mxu0
        %v777 = vmax.f32 %v666, 0.0
        %v778 = vmax.f32 %v668, 0.0
        %v779 = vmax.f32 %v755, 0.0
        %v780 = vmax.f32 %v757, 0.0
        %v781 = vmax.f32 %v672, 0.0
        %v782 = vmax.f32 %v674, 0.0
        %v783 = vmax.f32 %v761, 0.0
        %v784 = vmax.f32 %v763, 0.0
        %v785 = vmax.f32 %v678, 0.0
        %v786 = vmax.f32 %v680, 0.0
        %v787 = vmax.f32 %v767, 0.0
        %v788 = vmax.f32 %v769, 0.0
        %v789 = vmax.f32 %v684, 0.0
        %v790 = vmax.f32 %v686, 0.0
        %v791 = vmax.f32 %v773, 0.0
        %v792 = vmax.f32 %v775, 0.0
        %v793 = vld [vmem:[%s3] sm:$0xff]
        %v794 = vld [vmem:[%s3 + $0x8] sm:$0xff]
        %v795 = vld [vmem:[%s3 + $0x10] sm:$0xff]
        %v796 = vld [vmem:[%s3 + $0x18] sm:$0xff]
        %v797 = vld [vmem:[%s4] sm:$0xff]
        %v798 = vld [vmem:[%s4 + $0x8] sm:$0xff]
        %v799 = vld [vmem:[%s4 + $0x10] sm:$0xff]
        %v800 = vld [vmem:[%s4 + $0x18] sm:$0xff]
        %802 = vset.pattern.permute.xlu0 0
        %803 = vperm.xlu0 %802, %v797
        %v804 = vpop.permute.xlu0 %803
        %807 = vset.pattern.permute.xlu0 0
        %808 = vperm.xlu0 %807, %v798
        %v809 = vpop.permute.xlu0 %808
        %812 = vset.pattern.permute.xlu0 0
        %813 = vperm.xlu0 %812, %v799
        %v814 = vpop.permute.xlu0 %813
        %817 = vset.pattern.permute.xlu0 0
        %818 = vperm.xlu0 %817, %v800
        %v819 = vpop.permute.xlu0 %818
        %vm821 = vcmask 261120
        %v823 = vsel %vm821, %v793, 0
        %v826 = vsel %vm821, %v794, 0
        %v829 = vsel %vm821, %v795, 0
        %v832 = vsel %vm821, %v796, 0
        %834 = vmatprep.subr.mxu0 0.0
        %835 = vmatpush1.msra.mxu0 0.0
        %836 = vmatprep.subr.mxu0 0.0
        %837 = vmatpush1.msra.mxu0 0.0
        %838 = vmatprep.subr.mxu0 0.0
        %839 = vmatpush1.msra.mxu0 0.0
        %840 = vmatprep.subr.mxu0 0.0
        %841 = vmatpush1.msra.mxu0 0.0
        %842 = vmatprep.subr.mxu0 0.0
        %843 = vmatpush1.msra.mxu0 0.0
        %844 = vmatprep.subr.mxu0 0.0
        %845 = vmatpush1.msra.mxu0 0.0
        %846 = vmatprep.subr.mxu0 0.0
        %847 = vmatpush1.msra.mxu0 0.0
        %848 = vmatprep.subr.mxu0 0.0
        %849 = vmatpush1.msra.mxu0 0.0
        %850 = vmatprep.subr.mxu0 0.0
        %851 = vmatpush1.msra.mxu0 0.0
        %852 = vmatprep.subr.mxu0 0.0
        %853 = vmatpush1.msra.mxu0 0.0
        %854 = vmatprep.subr.mxu0 0.0
        %855 = vmatpush1.msra.mxu0 0.0
        %856 = vmatprep.subr.mxu0 0.0
        %857 = vmatpush1.msra.mxu0 0.0
        %858 = vmatprep.subr.mxu0 %v790
        %859 = vmatpush1.msra.mxu0 %v789
        %860 = vmatprep.subr.mxu0 %v786
        %861 = vmatpush1.msra.mxu0 %v785
        %862 = vmatprep.subr.mxu0 %v782
        %863 = vmatpush1.msra.mxu0 %v781
        %864 = vmatprep.subr.mxu0 %v778
        %865 = vmatpush1.msra.mxu0 %v777
        %866 = vmatprep.subr.mxu0 0.0
        %867 = vmatpush2.msra.mxu0 0.0
        %868 = vmatprep.subr.mxu0 0.0
        %869 = vmatpush2.msra.mxu0 0.0
        %870 = vmatprep.subr.mxu0 0.0
        %871 = vmatpush2.msra.mxu0 0.0
        %872 = vmatprep.subr.mxu0 0.0
        %873 = vmatpush2.msra.mxu0 0.0
        %874 = vmatprep.subr.mxu0 0.0
        %875 = vmatpush2.msra.mxu0 0.0
        %876 = vmatprep.subr.mxu0 0.0
        %877 = vmatpush2.msra.mxu0 0.0
        %878 = vmatprep.subr.mxu0 0.0
        %879 = vmatpush2.msra.mxu0 0.0
        %880 = vmatprep.subr.mxu0 0.0
        %881 = vmatpush2.msra.mxu0 0.0
        %882 = vmatprep.subr.mxu0 0.0
        %883 = vmatpush2.msra.mxu0 0.0
        %884 = vmatprep.subr.mxu0 0.0
        %885 = vmatpush2.msra.mxu0 0.0
        %886 = vmatprep.subr.mxu0 0.0
        %887 = vmatpush2.msra.mxu0 0.0
        %888 = vmatprep.subr.mxu0 0.0
        %889 = vmatpush2.msra.mxu0 0.0
        %890 = vmatprep.subr.mxu0 0.0
        %891 = vmatpush2.msra.mxu0 0.0
        %892 = vmatprep.subr.mxu0 0.0
        %893 = vmatpush2.msra.mxu0 0.0
        %894 = vmatprep.subr.mxu0 0.0
        %895 = vmatpush2.msra.mxu0 0.0
        %896 = vmatprep.subr.mxu0 0.0
        %897 = vmatpush2.msra.mxu0 0.0
        %898 = vmatprep.mubr.f32.mxu0 0.0
        %899 = vmatmul.mubr.f32.gmra.mxu0 %v823
        %v900 = vpop.f32.mrf.mxu0
        %v901 = vadd.f32 %v804, %v900
        %v902 = vpop.f32.mrf.mxu0
        %v903 = vadd.f32 %v804, %v902
        %904 = vmatprep.mubr.f32.mxu0 0.0
        %905 = vmatmul.mubr.f32.gmra.mxu0 %v826
        %v906 = vpop.f32.mrf.mxu0
        %v907 = vadd.f32 %v809, %v906
        %v908 = vpop.f32.mrf.mxu0
        %v909 = vadd.f32 %v809, %v908
        %910 = vmatprep.mubr.f32.mxu0 0.0
        %911 = vmatmul.mubr.f32.gmra.mxu0 %v829
        %v912 = vpop.f32.mrf.mxu0
        %v913 = vadd.f32 %v814, %v912
        %v914 = vpop.f32.mrf.mxu0
        %v915 = vadd.f32 %v814, %v914
        %916 = vmatprep.mubr.f32.mxu0 0.0
        %917 = vmatmul.mubr.f32.gmra.mxu0 %v832
        %v918 = vpop.f32.mrf.mxu0
        %v919 = vadd.f32 %v819, %v918
        %v920 = vpop.f32.mrf.mxu0
        %v921 = vadd.f32 %v819, %v920
        %922 = vdwg.mxu0
        %923 = vmatprep.subr.mxu0 0.0
        %924 = vmatpush1.msra.mxu0 0.0
        %925 = vmatprep.subr.mxu0 0.0
        %926 = vmatpush1.msra.mxu0 0.0
        %927 = vmatprep.subr.mxu0 0.0
        %928 = vmatpush1.msra.mxu0 0.0
        %929 = vmatprep.subr.mxu0 0.0
        %930 = vmatpush1.msra.mxu0 0.0
        %931 = vmatprep.subr.mxu0 0.0
        %932 = vmatpush1.msra.mxu0 0.0
        %933 = vmatprep.subr.mxu0 0.0
        %934 = vmatpush1.msra.mxu0 0.0
        %935 = vmatprep.subr.mxu0 0.0
        %936 = vmatpush1.msra.mxu0 0.0
        %937 = vmatprep.subr.mxu0 0.0
        %938 = vmatpush1.msra.mxu0 0.0
        %939 = vmatprep.subr.mxu0 0.0
        %940 = vmatpush1.msra.mxu0 0.0
        %941 = vmatprep.subr.mxu0 0.0
        %942 = vmatpush1.msra.mxu0 0.0
        %943 = vmatprep.subr.mxu0 0.0
        %944 = vmatpush1.msra.mxu0 0.0
        %945 = vmatprep.subr.mxu0 0.0
        %946 = vmatpush1.msra.mxu0 0.0
        %947 = vmatprep.subr.mxu0 %v792
        %948 = vmatpush1.msra.mxu0 %v791
        %949 = vmatprep.subr.mxu0 %v788
        %950 = vmatpush1.msra.mxu0 %v787
        %951 = vmatprep.subr.mxu0 %v784
        %952 = vmatpush1.msra.mxu0 %v783
        %953 = vmatprep.subr.mxu0 %v780
        %954 = vmatpush1.msra.mxu0 %v779
        %955 = vmatprep.subr.mxu0 0.0
        %956 = vmatpush2.msra.mxu0 0.0
        %957 = vmatprep.subr.mxu0 0.0
        %958 = vmatpush2.msra.mxu0 0.0
        %959 = vmatprep.subr.mxu0 0.0
        %960 = vmatpush2.msra.mxu0 0.0
        %961 = vmatprep.subr.mxu0 0.0
        %962 = vmatpush2.msra.mxu0 0.0
        %963 = vmatprep.subr.mxu0 0.0
        %964 = vmatpush2.msra.mxu0 0.0
        %965 = vmatprep.subr.mxu0 0.0
        %966 = vmatpush2.msra.mxu0 0.0
        %967 = vmatprep.subr.mxu0 0.0
        %968 = vmatpush2.msra.mxu0 0.0
        %969 = vmatprep.subr.mxu0 0.0
        %970 = vmatpush2.msra.mxu0 0.0
        %971 = vmatprep.subr.mxu0 0.0
        %972 = vmatpush2.msra.mxu0 0.0
        %973 = vmatprep.subr.mxu0 0.0
        %974 = vmatpush2.msra.mxu0 0.0
        %975 = vmatprep.subr.mxu0 0.0
        %976 = vmatpush2.msra.mxu0 0.0
        %977 = vmatprep.subr.mxu0 0.0
        %978 = vmatpush2.msra.mxu0 0.0
        %979 = vmatprep.subr.mxu0 0.0
        %980 = vmatpush2.msra.mxu0 0.0
        %981 = vmatprep.subr.mxu0 0.0
        %982 = vmatpush2.msra.mxu0 0.0
        %983 = vmatprep.subr.mxu0 0.0
        %984 = vmatpush2.msra.mxu0 0.0
        %985 = vmatprep.subr.mxu0 0.0
        %986 = vmatpush2.msra.mxu0 0.0
        %987 = vmatprep.mubr.f32.mxu0 0.0
        %988 = vmatmul.mubr.f32.gmra.mxu0 %v823
        %v989 = vpop.f32.mrf.mxu0
        %v990 = vadd.f32 %v804, %v989
        %v991 = vpop.f32.mrf.mxu0
        %v992 = vadd.f32 %v804, %v991
        %993 = vmatprep.mubr.f32.mxu0 0.0
        %994 = vmatmul.mubr.f32.gmra.mxu0 %v826
        %v995 = vpop.f32.mrf.mxu0
        %v996 = vadd.f32 %v809, %v995
        %v997 = vpop.f32.mrf.mxu0
        %v998 = vadd.f32 %v809, %v997
        %999 = vmatprep.mubr.f32.mxu0 0.0
        %1000 = vmatmul.mubr.f32.gmra.mxu0 %v829
        %v1001 = vpop.f32.mrf.mxu0
        %v1002 = vadd.f32 %v814, %v1001
        %v1003 = vpop.f32.mrf.mxu0
        %v1004 = vadd.f32 %v814, %v1003
        %1005 = vmatprep.mubr.f32.mxu0 0.0
        %1006 = vmatmul.mubr.f32.gmra.mxu0 %v832
        %v1007 = vpop.f32.mrf.mxu0
        %v1008 = vadd.f32 %v819, %v1007
        %v1009 = vpop.f32.mrf.mxu0
        %v1010 = vadd.f32 %v819, %v1009
        %1011 = vdwg.mxu0
        %v1012 = vmax.f32 %v901, 0.0
        %v1013 = vmax.f32 %v903, 0.0
        %v1014 = vmax.f32 %v990, 0.0
        %v1015 = vmax.f32 %v992, 0.0
        %v1016 = vmax.f32 %v907, 0.0
        %v1017 = vmax.f32 %v909, 0.0
        %v1018 = vmax.f32 %v996, 0.0
        %v1019 = vmax.f32 %v998, 0.0
        %v1020 = vmax.f32 %v913, 0.0
        %v1021 = vmax.f32 %v915, 0.0
        %v1022 = vmax.f32 %v1002, 0.0
        %v1023 = vmax.f32 %v1004, 0.0
        %v1024 = vmax.f32 %v919, 0.0
        %v1025 = vmax.f32 %v921, 0.0
        %v1026 = vmax.f32 %v1008, 0.0
        %v1027 = vmax.f32 %v1010, 0.0
        %v1028 = vld [vmem:[%s5] sm:$0x1]
        %v1029 = vld [vmem:[#allocation2] sm:$0x1]
        %1031 = vset.pattern.permute.xlu0 0
        %1032 = vperm.xlu0 %1031, %v1029
        %v1033 = vpop.permute.xlu0 %1032
        %v1035 = vlaneseq
        %v1036 = vshrl.u32 %v1035, 7
        %v1037 = vsub.s32 0, %v1036
        %v1038 = vrot.slane %v1033, %v1037
        %v1040 = vsel %vm821, %v1028, 0
        %1042 = vmatprep.subr.mxu0 0.0
        %1043 = vmatpush1.msra.mxu0 0.0
        %1044 = vmatprep.subr.mxu0 0.0
        %1045 = vmatpush1.msra.mxu0 0.0
        %1046 = vmatprep.subr.mxu0 0.0
        %1047 = vmatpush1.msra.mxu0 0.0
        %1048 = vmatprep.subr.mxu0 0.0
        %1049 = vmatpush1.msra.mxu0 0.0
        %1050 = vmatprep.subr.mxu0 0.0
        %1051 = vmatpush1.msra.mxu0 0.0
        %1052 = vmatprep.subr.mxu0 0.0
        %1053 = vmatpush1.msra.mxu0 0.0
        %1054 = vmatprep.subr.mxu0 0.0
        %1055 = vmatpush1.msra.mxu0 0.0
        %1056 = vmatprep.subr.mxu0 0.0
        %1057 = vmatpush1.msra.mxu0 0.0
        %1058 = vmatprep.subr.mxu0 0.0
        %1059 = vmatpush1.msra.mxu0 0.0
        %1060 = vmatprep.subr.mxu0 0.0
        %1061 = vmatpush1.msra.mxu0 0.0
        %1062 = vmatprep.subr.mxu0 0.0
        %1063 = vmatpush1.msra.mxu0 0.0
        %1064 = vmatprep.subr.mxu0 0.0
        %1065 = vmatpush1.msra.mxu0 0.0
        %1066 = vmatprep.subr.mxu0 %v1025
        %1067 = vmatpush1.msra.mxu0 %v1024
        %1068 = vmatprep.subr.mxu0 %v1021
        %1069 = vmatpush1.msra.mxu0 %v1020
        %1070 = vmatprep.subr.mxu0 %v1017
        %1071 = vmatpush1.msra.mxu0 %v1016
        %1072 = vmatprep.subr.mxu0 %v1013
        %1073 = vmatpush1.msra.mxu0 %v1012
        %1074 = vmatprep.subr.mxu0 0.0
        %1075 = vmatpush2.msra.mxu0 0.0
        %1076 = vmatprep.subr.mxu0 0.0
        %1077 = vmatpush2.msra.mxu0 0.0
        %1078 = vmatprep.subr.mxu0 0.0
        %1079 = vmatpush2.msra.mxu0 0.0
        %1080 = vmatprep.subr.mxu0 0.0
        %1081 = vmatpush2.msra.mxu0 0.0
        %1082 = vmatprep.subr.mxu0 0.0
        %1083 = vmatpush2.msra.mxu0 0.0
        %1084 = vmatprep.subr.mxu0 0.0
        %1085 = vmatpush2.msra.mxu0 0.0
        %1086 = vmatprep.subr.mxu0 0.0
        %1087 = vmatpush2.msra.mxu0 0.0
        %1088 = vmatprep.subr.mxu0 0.0
        %1089 = vmatpush2.msra.mxu0 0.0
        %1090 = vmatprep.subr.mxu0 0.0
        %1091 = vmatpush2.msra.mxu0 0.0
        %1092 = vmatprep.subr.mxu0 0.0
        %1093 = vmatpush2.msra.mxu0 0.0
        %1094 = vmatprep.subr.mxu0 0.0
        %1095 = vmatpush2.msra.mxu0 0.0
        %1096 = vmatprep.subr.mxu0 0.0
        %1097 = vmatpush2.msra.mxu0 0.0
        %1098 = vmatprep.subr.mxu0 0.0
        %1099 = vmatpush2.msra.mxu0 0.0
        %1100 = vmatprep.subr.mxu0 0.0
        %1101 = vmatpush2.msra.mxu0 0.0
        %1102 = vmatprep.subr.mxu0 0.0
        %1103 = vmatpush2.msra.mxu0 0.0
        %1104 = vmatprep.subr.mxu0 0.0
        %1105 = vmatpush2.msra.mxu0 0.0
        %1106 = vmatprep.mubr.f32.mxu0 0.0
        %1107 = vmatmul.mubr.f32.gmra.mxu0 %v1040
        %v1108 = vpop.f32.mrf.mxu0
        %v1109 = vadd.f32 %v1038, %v1108
        %v1110 = vpop.f32.mrf.mxu0
        %v1111 = vadd.f32 %v1038, %v1110
        %1112 = vdwg.mxu0
        %1113 = vmatprep.subr.mxu0 0.0
        %1114 = vmatpush1.msra.mxu0 0.0
        %1115 = vmatprep.subr.mxu0 0.0
        %1116 = vmatpush1.msra.mxu0 0.0
        %1117 = vmatprep.subr.mxu0 0.0
        %1118 = vmatpush1.msra.mxu0 0.0
        %1119 = vmatprep.subr.mxu0 0.0
        %1120 = vmatpush1.msra.mxu0 0.0
        %1121 = vmatprep.subr.mxu0 0.0
        %1122 = vmatpush1.msra.mxu0 0.0
        %1123 = vmatprep.subr.mxu0 0.0
        %1124 = vmatpush1.msra.mxu0 0.0
        %1125 = vmatprep.subr.mxu0 0.0
        %1126 = vmatpush1.msra.mxu0 0.0
        %1127 = vmatprep.subr.mxu0 0.0
        %1128 = vmatpush1.msra.mxu0 0.0
        %1129 = vmatprep.subr.mxu0 0.0
        %1130 = vmatpush1.msra.mxu0 0.0
        %1131 = vmatprep.subr.mxu0 0.0
        %1132 = vmatpush1.msra.mxu0 0.0
        %1133 = vmatprep.subr.mxu0 0.0
        %1134 = vmatpush1.msra.mxu0 0.0
        %1135 = vmatprep.subr.mxu0 0.0
        %1136 = vmatpush1.msra.mxu0 0.0
        %1137 = vmatprep.subr.mxu0 %v1027
        %1138 = vmatpush1.msra.mxu0 %v1026
        %1139 = vmatprep.subr.mxu0 %v1023
        %1140 = vmatpush1.msra.mxu0 %v1022
        %1141 = vmatprep.subr.mxu0 %v1019
        %1142 = vmatpush1.msra.mxu0 %v1018
        %1143 = vmatprep.subr.mxu0 %v1015
        %1144 = vmatpush1.msra.mxu0 %v1014
        %1145 = vmatprep.subr.mxu0 0.0
        %1146 = vmatpush2.msra.mxu0 0.0
        %1147 = vmatprep.subr.mxu0 0.0
        %1148 = vmatpush2.msra.mxu0 0.0
        %1149 = vmatprep.subr.mxu0 0.0
        %1150 = vmatpush2.msra.mxu0 0.0
        %1151 = vmatprep.subr.mxu0 0.0
        %1152 = vmatpush2.msra.mxu0 0.0
        %1153 = vmatprep.subr.mxu0 0.0
        %1154 = vmatpush2.msra.mxu0 0.0
        %1155 = vmatprep.subr.mxu0 0.0
        %1156 = vmatpush2.msra.mxu0 0.0
        %1157 = vmatprep.subr.mxu0 0.0
        %1158 = vmatpush2.msra.mxu0 0.0
        %1159 = vmatprep.subr.mxu0 0.0
        %1160 = vmatpush2.msra.mxu0 0.0
        %1161 = vmatprep.subr.mxu0 0.0
        %1162 = vmatpush2.msra.mxu0 0.0
        %1163 = vmatprep.subr.mxu0 0.0
        %1164 = vmatpush2.msra.mxu0 0.0
        %1165 = vmatprep.subr.mxu0 0.0
        %1166 = vmatpush2.msra.mxu0 0.0
        %1167 = vmatprep.subr.mxu0 0.0
        %1168 = vmatpush2.msra.mxu0 0.0
        %1169 = vmatprep.subr.mxu0 0.0
        %1170 = vmatpush2.msra.mxu0 0.0
        %1171 = vmatprep.subr.mxu0 0.0
        %1172 = vmatpush2.msra.mxu0 0.0
        %1173 = vmatprep.subr.mxu0 0.0
        %1174 = vmatpush2.msra.mxu0 0.0
        %1175 = vmatprep.subr.mxu0 0.0
        %1176 = vmatpush2.msra.mxu0 0.0
        %1177 = vmatprep.mubr.f32.mxu0 0.0
        %1178 = vmatmul.mubr.f32.gmra.mxu0 %v1040
        %v1179 = vpop.f32.mrf.mxu0
        %v1180 = vadd.f32 %v1038, %v1179
        %v1181 = vpop.f32.mrf.mxu0
        %v1182 = vadd.f32 %v1038, %v1181
        %1183 = vdwg.mxu0
        %v1188 = vcombine.low %v1109, %v1111
        %v1189 = vcombine.low %v1180, %v1182
        %v1191 = vunpack.c.l.s4 1966171168
        %v1192 = vunpack.c.0.s8 %v1191
        %v1193 = vlaneseq
        %v1194 = vshrl.u32 %v1193, 7
        %v1195 = vsub.s32 %v1192, %v1194
        %v1196 = vrot.slane %v1188, %v1195
        %v1198 = vunpack.c.l.s4 1966171168
        %v1199 = vunpack.c.0.s8 %v1198
        %v1200 = vlaneseq
        %v1201 = vshrl.u32 %v1200, 7
        %v1202 = vsub.s32 %v1199, %v1201
        %v1203 = vrot.slane %v1189, %v1202
        %v1204 = vcombine.low %v1196, %v1203
        %v1206 = vunpack.c.l.s4 1966171168
        %v1207 = vunpack.c.0.s8 %v1206
        %v1208 = vlaneseq
        %v1209 = vshrl.u32 %v1208, 7
        %v1210 = vsub.s32 %v1207, %v1209
        %v1211 = vrot.slane %v1204, %v1210
        %v1213 = vlaneseq
        %vm1214 = vcmp.ge.s32.totalorder %v1213, 0
        %vm1215 = vcmp.lt.s32.totalorder %v1213, 512
        %vm1216 = vmand %vm1214, %vm1215
        %1217 = vst.msk [vmem:[%s286] sm:$0xf] %vm1216, %v1211
        %s1218 = sand.u32 %s183, 1
        %s1219 = scalar_lea.sflag [#allocation4], %s1218
        %s1220 = sand.u32 %s183, 1
        %s1221 = smul.addr %s1220, 4
        %s1222 = scalar_lea.vmem [#allocation3], %s1221
        // Predicated region
        $region49: #{tpu_custom_call.1} parent=47 // pred_check
          %p1223 = pneg %p193
        $region50: #{tpu_custom_call.1} parent=47 // pred_check_branch
          %1225 = sbr.rel (%p1223) target = $region52
        $region51: #{tpu_custom_call.1} parent=47 // pred_region
          %s1226 = smul.u32 4, %s23
          %s1228 = ssub.s32 64, 64
          %1229 = vsyncadd %s1219, %s1228
          %s1230 = smul.addr %s1226, 16
          %s1231 = scalar_lea.hbm %s7, %s1230
          %s1233 = sshll.u32 %s1222, 4
          %s1234 = int_to_ptr.vmem [resolvable:$true] %s1233
          %1236 = dma.vmem_to_hbm [thread:$0]  %s1234, 64, %s1231, %s1219
        $region52: #{tpu_custom_call.1} parent=47 // pred_fallthru
          _
      $region48: #{tpu_custom_call.1} parent=5 // pred_fallthru
        _
      %p1237 = scmp.le.s32.totalorder 2, %s18
      // Predicated region
      $region53: #{tpu_custom_call.1} parent=5 // pred_check
        %p1238 = pneg %p1237
      $region54: #{tpu_custom_call.1} parent=5 // pred_check_branch
        %1240 = sbr.rel (%p1238) target = $region56
      $region55: #{tpu_custom_call.1} parent=5 // pred_region
        %s1241 = ssub.s32 %s18, 2
        // Predicated region
        $region57: #{tpu_custom_call.1} parent=55 // pred_check
          %p1242 = pneg %p199
        $region58: #{tpu_custom_call.1} parent=55 // pred_check_branch
          %1244 = sbr.rel (%p1242) target = $region60
        $region59: #{tpu_custom_call.1} parent=55 // pred_region
          %s1245 = sand.u32 %s184, 1
          %s1246 = scalar_lea.sflag [#allocation4], %s1245
          %s1247 = sand.u32 %s184, 1
          %s1248 = smul.addr %s1247, 4
          %s1249 = scalar_lea.vmem [#allocation3], %s1248
          %1250 = dma.done %s1246, 64
        $region60: #{tpu_custom_call.1} parent=55 // pred_fallthru
          _
      $region56: #{tpu_custom_call.1} parent=5 // pred_fallthru
        _
    $region6: #{tpu_custom_call.1} parent=1 // loop_footer
      %s22 = sadd.s32 1, %s18
    $region7: #{tpu_custom_call.1} parent=1 // loop_footer_branch
      %17 = sbr.rel target = $region3
    $region8: #{tpu_custom_call.1} parent=1 // loop_exit
      _
    %1251 = vsyncpa [#allocation4], 1
    %s1252 = scalar_lea.sflag [#allocation4], 1
    %1253 = vsyncpa %s1252, 1

</llo_original>
